<compile_context>
chip_gen: v7x
topology: tpu7x:2x2x1
jax: 0.10.0
libtpu: 0.0.40
codegen_flags: <defaults>
</compile_context>

<pallas_src>
import jax
import jax.numpy as jnp
from jax.experimental import pallas as pl
from jax.experimental.pallas import tpu as pltpu


OUT_LANE = 128   # lane-dense pad for the final (HBM-stored) output only
K_UNIT = 32      # pad unit for contraction / intermediate feature dims (>= bf16 sublane pack)


def _round_up(x, m):
    return ((x + m - 1) // m) * m


def _build_kernel(num_layers, num_edge_types, dm_pads):
    """Kernel computing the full stacked RelGN forward, everything resident in VMEM.

    Inputs (all whole-array VMEM refs, no grid):
      adj_ref:  [N, E*N]        bf16  edge-type-concatenated adjacency (dst, e*N+src)
      h0_ref:   [N, K0]         f32   padded input node features
      per layer l: wmsg [K_l, E*dm_l] bf16, bmsg [1, E*dm_l] f32,
                   wnode [dm_l, Do_l] bf16, bnode [1, Do_l] f32
      out_ref:  [N, 128]        f32   lane-dense padded output node features
    """

    def kernel(*refs):
        adj_ref, h0_ref = refs[0], refs[1]
        param_refs = refs[2:2 + 4 * num_layers]
        out_ref = refs[2 + 4 * num_layers]

        h = h0_ref[...]                                           # [N, K0] f32
        for l in range(num_layers):                               # static unroll, L small
            wm_ref, bm_ref, wn_ref, bn_ref = param_refs[4 * l:4 * l + 4]
            dm = dm_pads[l]

            # Message encoder for ALL edge types fused into one MXU matmul.
            msg = jnp.dot(h.astype(jnp.bfloat16), wm_ref[...],
                          preferred_element_type=jnp.float32)     # [N, E*dm] f32
            msg = jnp.maximum(msg + bm_ref[...], 0.0).astype(jnp.bfloat16)

            # Stack per-edge-type messages along rows -> [E*N, dm] so the aggregation
            # over all edge types collapses to a single matmul against the
            # pre-concatenated adjacency [N, E*N] (one MXU fill/drain instead of E).
            mstk = jnp.concatenate(
                [msg[:, e * dm:(e + 1) * dm] for e in range(num_edge_types)],
                axis=0)                                           # [E*N, dm] bf16
            agg = jnp.dot(adj_ref[...], mstk,
                          preferred_element_type=jnp.float32)     # [N, dm] f32

            # Node-update encoder.
            upd = jnp.dot(agg.astype(jnp.bfloat16), wn_ref[...],
                          preferred_element_type=jnp.float32)     # [N, Do_l] f32
            h = jnp.maximum(upd + bn_ref[...], 0.0)

        out_ref[...] = h                                          # [N, 128] unmasked vst

    return kernel


def pack_params(layer_params):
    """One-time (init-time) packing: pad to MXU-friendly sizes, bf16 weights, edge types
    concatenated along the lane axis.  NOT part of the per-call forward path."""
    num_layers = len(layer_params)
    num_edge_types = layer_params[0]["w_msg"].shape[0]

    k0_pad = _round_up(layer_params[0]["w_msg"].shape[1], K_UNIT)
    in_pad = k0_pad
    dm_pads, flat = [], []
    for l, p in enumerate(layer_params):
        w_msg, b_msg = p["w_msg"], p["b_msg"]        # [E, d_in, d_msg], [E, 1, d_msg]
        w_node, b_node = p["w_node"], p["b_node"]    # [d_msg, d_out],   [1, d_out]
        e, d_in, d_msg = w_msg.shape
        d_out = w_node.shape[1]
        assert e == num_edge_types and d_in <= in_pad

        dm = _round_up(d_msg, K_UNIT)
        # Only the final layer's output is lane-padded to 128 (it is stored to HBM);
        # intermediate hidden widths stay minimally padded (they live in vregs only).
        do = OUT_LANE if l == num_layers - 1 else _round_up(d_out, K_UNIT)

        wm = jnp.pad(w_msg, ((0, 0), (0, in_pad - d_in), (0, dm - d_msg)))
        wm = jnp.transpose(wm, (1, 0, 2)).reshape(in_pad, e * dm)
        bm = jnp.pad(b_msg, ((0, 0), (0, 0), (0, dm - d_msg)))
        bm = jnp.transpose(bm, (1, 0, 2)).reshape(1, e * dm)
        wn = jnp.pad(w_node, ((0, dm - d_msg), (0, do - d_out)))
        bn = jnp.pad(b_node, ((0, 0), (0, do - d_out)))

        flat += [wm.astype(jnp.bfloat16), bm.astype(jnp.float32),
                 wn.astype(jnp.bfloat16), bn.astype(jnp.float32)]
        dm_pads.append(dm)
        in_pad = do   # next layer's contraction width == this layer's (padded) output width

    return dict(num_layers=num_layers, num_edge_types=num_edge_types,
                k0_pad=k0_pad, dm_pads=tuple(dm_pads),
                d_out_final=layer_params[-1]["w_node"].shape[1],
                flat_params=tuple(flat))


def pack_adjacency(adj):
    """One-time: concatenate edge types along the src axis -> [N, E*N] bf16.
    bf16 is exact for 0/1 adjacency; use f32 here if edges are ever weighted."""
    e, n, _ = adj.shape
    adj_cat = jnp.transpose(adj, (1, 0, 2)).reshape(n, e * n)
    return adj_cat.astype(jnp.bfloat16)


def make_relational_gn_forward(packed, n_nodes):
    """Build the jitted per-call forward: pad node features -> fused kernel -> slice."""
    kernel = _build_kernel(packed["num_layers"], packed["num_edge_types"],
                           packed["dm_pads"])
    num_inputs = 2 + 4 * packed["num_layers"]
    vmem = pl.BlockSpec(memory_space=pltpu.MemorySpace.VMEM)
    call = pl.pallas_call(
        kernel,
        out_shape=jax.ShapeDtypeStruct((n_nodes, OUT_LANE), jnp.float32),
        in_specs=[vmem] * num_inputs,
        out_specs=vmem,
    )
    k0_pad = packed["k0_pad"]
    d_out_final = packed["d_out_final"]
    flat_params = packed["flat_params"]

    @jax.jit
    def forward(node_feature, adj_cat):
        n, d_in0 = node_feature.shape
        h0 = jnp.pad(node_feature.astype(jnp.float32),
                     ((0, 0), (0, k0_pad - d_in0)))
        out = call(adj_cat, h0, *flat_params)
        return out[:, :d_out_final]    # graph.ndata['node_feature'] equivalent

    return forward


def init_block_params(key, num_edge_types, d_in, d_msg, d_out):
    k1, k2, k3, k4 = jax.random.split(key, 4)
    scale_msg = 1.0 / jnp.sqrt(d_in)
    scale_node = 1.0 / jnp.sqrt(d_msg)
    return dict(
        w_msg=(jax.random.normal(k1, (num_edge_types, d_in, d_msg),
                                 jnp.float32) * scale_msg),
        b_msg=(jax.random.normal(k2, (num_edge_types, 1, d_msg),
                                 jnp.float32) * 0.01),
        w_node=(jax.random.normal(k3, (d_msg, d_out), jnp.float32) * scale_node),
        b_node=(jax.random.normal(k4, (1, d_out), jnp.float32) * 0.01),
    )


def rel_gn_reference(node_feature, adj, layer_params):
    """Pure-JAX reference (unpadded, same bf16-input / f32-accum precision policy)."""
    h = node_feature.astype(jnp.float32)
    adj_b = adj.astype(jnp.bfloat16)
    for p in layer_params:
        w_msg = p["w_msg"].astype(jnp.bfloat16)
        w_node = p["w_node"].astype(jnp.bfloat16)
        msg = jnp.einsum("nd,edm->enm", h.astype(jnp.bfloat16), w_msg,
                         preferred_element_type=jnp.float32)
        msg = jnp.maximum(msg + p["b_msg"], 0.0)
        agg = jnp.einsum("enm,emd->nd", adj_b, msg.astype(jnp.bfloat16),
                         preferred_element_type=jnp.float32)
        upd = jnp.dot(agg.astype(jnp.bfloat16), w_node,
                      preferred_element_type=jnp.float32)
        h = jnp.maximum(upd + p["b_node"], 0.0)
    return h


if __name__ == "__main__":
    # Hyperparameters (small, consistent with the module __init__ signature)
    num_hidden_layers = 1
    nf_init_dim = 8
    hidden_dim = 32
    output_dim = 16
    num_edge_types = 3
    num_neurons = 32     # message-encoder width
    N = 16               # number of graph nodes
    # TODO(synk): for real workloads batch multiple graphs along the node/sublane axis so
    # the MXU row dim reaches >=128 (v5e) / 256 (v6e/v7x) before further MXU tuning.

    key = jax.random.PRNGKey(0)
    k_feat, k_adj, k_params = jax.random.split(key, 3)

    # Graph: dense per-edge-type adjacency [E, N, N], node features [N, nf_init_dim]
    adj = (jax.random.uniform(k_adj, (num_edge_types, N, N)) < 0.3
           ).astype(jnp.float32)
    node_feature = jax.random.normal(k_feat, (N, nf_init_dim), jnp.float32)

    # Layer stack: first (nf_init_dim -> hidden), hidden layers (hidden -> hidden),
    # output layer (hidden -> output_dim)
    dims = ([(nf_init_dim, hidden_dim)]
            + [(hidden_dim, hidden_dim)] * num_hidden_layers
            + [(hidden_dim, output_dim)])
    layer_keys = jax.random.split(k_params, len(dims))
    layer_params = [
        init_block_params(lk, num_edge_types, d_in, num_neurons, d_out)
        for lk, (d_in, d_out) in zip(layer_keys, dims)
    ]

    # One-time packing (hoisted out of the per-call forward path).
    packed = pack_params(layer_params)
    adj_cat = pack_adjacency(adj)
    forward = make_relational_gn_forward(packed, N)

    out = jax.block_until_ready(forward(node_feature, adj_cat))
    assert out.shape == (N, output_dim), out.shape
    assert bool(jnp.all(jnp.isfinite(out)))

    # Numerical check against the pure-JAX reference (same precision policy).
    ref = jax.block_until_ready(rel_gn_reference(node_feature, adj, layer_params))
    max_err = float(jnp.max(jnp.abs(out - ref)))
    denom = float(jnp.max(jnp.abs(ref))) + 1.0
    assert max_err <= 1e-2 * denom, (max_err, denom)

    print("KERNEL_OK")
</pallas_src>

<mosaic_0001>
module attributes {stable_mosaic.version = 11 : i64} {
  func.func @kernel(%arg0: memref<16x48xbf16, #tpu.memory_space<vmem>>, %arg1: memref<16x32xf32, #tpu.memory_space<vmem>>, %arg2: memref<32x96xbf16, #tpu.memory_space<vmem>>, %arg3: memref<1x96xf32, #tpu.memory_space<vmem>>, %arg4: memref<32x32xbf16, #tpu.memory_space<vmem>>, %arg5: memref<1x32xf32, #tpu.memory_space<vmem>>, %arg6: memref<32x96xbf16, #tpu.memory_space<vmem>>, %arg7: memref<1x96xf32, #tpu.memory_space<vmem>>, %arg8: memref<32x32xbf16, #tpu.memory_space<vmem>>, %arg9: memref<1x32xf32, #tpu.memory_space<vmem>>, %arg10: memref<32x96xbf16, #tpu.memory_space<vmem>>, %arg11: memref<1x96xf32, #tpu.memory_space<vmem>>, %arg12: memref<32x128xbf16, #tpu.memory_space<vmem>>, %arg13: memref<1x128xf32, #tpu.memory_space<vmem>>, %arg14: memref<16x128xf32, #tpu.memory_space<vmem>>) attributes {dimension_semantics = [], scalar_prefetch = 0 : i64, scratch_operands = 0 : i64, tpu.core_type = #tpu.core_type<tc>} {
    %c0 = arith.constant 0 : index
    %c0_0 = arith.constant 0 : index
    %0 = vector.load %arg1[%c0, %c0_0] : memref<16x32xf32, #tpu.memory_space<vmem>>, vector<16x32xf32>
    %1 = arith.truncf %0 : vector<16x32xf32> to vector<16x32xbf16>
    %c0_1 = arith.constant 0 : index
    %c0_2 = arith.constant 0 : index
    %2 = vector.load %arg2[%c0_1, %c0_2] : memref<32x96xbf16, #tpu.memory_space<vmem>>, vector<32x96xbf16>
    %cst = arith.constant dense<0.000000e+00> : vector<16x96xf32>
    %3 = tpu.matmul %1, %2, %cst {dimension_numbers = #tpu.dot_dimension_numbers<[1], [0], [0], [1], [0, 0, 1, 1], [], []>} : vector<16x32xbf16>, vector<32x96xbf16>, vector<16x96xf32> -> vector<16x96xf32>
    %c0_3 = arith.constant 0 : index
    %c0_4 = arith.constant 0 : index
    %4 = vector.load %arg3[%c0_3, %c0_4] : memref<1x96xf32, #tpu.memory_space<vmem>>, vector<1x96xf32>
    %5 = vector.broadcast %4 : vector<1x96xf32> to vector<16x96xf32>
    %6 = arith.addf %3, %5 : vector<16x96xf32>
    %cst_5 = arith.constant 0.000000e+00 : f32
    %7 = vector.broadcast %cst_5 : f32 to vector<16x96xf32>
    %8 = arith.maximumf %6, %7 : vector<16x96xf32>
    %9 = arith.truncf %8 : vector<16x96xf32> to vector<16x96xbf16>
    %10 = vector.extract_strided_slice %9 {offsets = [0, 0], sizes = [16, 32], strides = [1, 1]} : vector<16x96xbf16> to vector<16x32xbf16>
    %11 = vector.extract_strided_slice %9 {offsets = [0, 32], sizes = [16, 32], strides = [1, 1]} : vector<16x96xbf16> to vector<16x32xbf16>
    %12 = vector.extract_strided_slice %9 {offsets = [0, 64], sizes = [16, 32], strides = [1, 1]} : vector<16x96xbf16> to vector<16x32xbf16>
    %13 = tpu.concatenate %10, %11, %12 in 0 : vector<16x32xbf16>, vector<16x32xbf16>, vector<16x32xbf16> -> vector<48x32xbf16>
    %c0_6 = arith.constant 0 : index
    %c0_7 = arith.constant 0 : index
    %14 = vector.load %arg0[%c0_6, %c0_7] : memref<16x48xbf16, #tpu.memory_space<vmem>>, vector<16x48xbf16>
    %cst_8 = arith.constant dense<0.000000e+00> : vector<16x32xf32>
    %15 = tpu.matmul %14, %13, %cst_8 {dimension_numbers = #tpu.dot_dimension_numbers<[1], [0], [0], [1], [0, 0, 1, 1], [], []>} : vector<16x48xbf16>, vector<48x32xbf16>, vector<16x32xf32> -> vector<16x32xf32>
    %16 = arith.truncf %15 : vector<16x32xf32> to vector<16x32xbf16>
    %c0_9 = arith.constant 0 : index
    %c0_10 = arith.constant 0 : index
    %17 = vector.load %arg4[%c0_9, %c0_10] : memref<32x32xbf16, #tpu.memory_space<vmem>>, vector<32x32xbf16>
    %cst_11 = arith.constant dense<0.000000e+00> : vector<16x32xf32>
    %18 = tpu.matmul %16, %17, %cst_11 {dimension_numbers = #tpu.dot_dimension_numbers<[1], [0], [0], [1], [0, 0, 1, 1], [], []>} : vector<16x32xbf16>, vector<32x32xbf16>, vector<16x32xf32> -> vector<16x32xf32>
    %c0_12 = arith.constant 0 : index
    %c0_13 = arith.constant 0 : index
    %19 = vector.load %arg5[%c0_12, %c0_13] : memref<1x32xf32, #tpu.memory_space<vmem>>, vector<1x32xf32>
    %20 = vector.broadcast %19 : vector<1x32xf32> to vector<16x32xf32>
    %21 = arith.addf %18, %20 : vector<16x32xf32>
    %cst_14 = arith.constant 0.000000e+00 : f32
    %22 = vector.broadcast %cst_14 : f32 to vector<16x32xf32>
    %23 = arith.maximumf %21, %22 : vector<16x32xf32>
    %24 = arith.truncf %23 : vector<16x32xf32> to vector<16x32xbf16>
    %c0_15 = arith.constant 0 : index
    %c0_16 = arith.constant 0 : index
    %25 = vector.load %arg6[%c0_15, %c0_16] : memref<32x96xbf16, #tpu.memory_space<vmem>>, vector<32x96xbf16>
    %cst_17 = arith.constant dense<0.000000e+00> : vector<16x96xf32>
    %26 = tpu.matmul %24, %25, %cst_17 {dimension_numbers = #tpu.dot_dimension_numbers<[1], [0], [0], [1], [0, 0, 1, 1], [], []>} : vector<16x32xbf16>, vector<32x96xbf16>, vector<16x96xf32> -> vector<16x96xf32>
    %c0_18 = arith.constant 0 : index
    %c0_19 = arith.constant 0 : index
    %27 = vector.load %arg7[%c0_18, %c0_19] : memref<1x96xf32, #tpu.memory_space<vmem>>, vector<1x96xf32>
    %28 = vector.broadcast %27 : vector<1x96xf32> to vector<16x96xf32>
    %29 = arith.addf %26, %28 : vector<16x96xf32>
    %cst_20 = arith.constant 0.000000e+00 : f32
    %30 = vector.broadcast %cst_20 : f32 to vector<16x96xf32>
    %31 = arith.maximumf %29, %30 : vector<16x96xf32>
    %32 = arith.truncf %31 : vector<16x96xf32> to vector<16x96xbf16>
    %33 = vector.extract_strided_slice %32 {offsets = [0, 0], sizes = [16, 32], strides = [1, 1]} : vector<16x96xbf16> to vector<16x32xbf16>
    %34 = vector.extract_strided_slice %32 {offsets = [0, 32], sizes = [16, 32], strides = [1, 1]} : vector<16x96xbf16> to vector<16x32xbf16>
    %35 = vector.extract_strided_slice %32 {offsets = [0, 64], sizes = [16, 32], strides = [1, 1]} : vector<16x96xbf16> to vector<16x32xbf16>
    %36 = tpu.concatenate %33, %34, %35 in 0 : vector<16x32xbf16>, vector<16x32xbf16>, vector<16x32xbf16> -> vector<48x32xbf16>
    %c0_21 = arith.constant 0 : index
    %c0_22 = arith.constant 0 : index
    %37 = vector.load %arg0[%c0_21, %c0_22] : memref<16x48xbf16, #tpu.memory_space<vmem>>, vector<16x48xbf16>
    %cst_23 = arith.constant dense<0.000000e+00> : vector<16x32xf32>
    %38 = tpu.matmul %37, %36, %cst_23 {dimension_numbers = #tpu.dot_dimension_numbers<[1], [0], [0], [1], [0, 0, 1, 1], [], []>} : vector<16x48xbf16>, vector<48x32xbf16>, vector<16x32xf32> -> vector<16x32xf32>
    %39 = arith.truncf %38 : vector<16x32xf32> to vector<16x32xbf16>
    %c0_24 = arith.constant 0 : index
    %c0_25 = arith.constant 0 : index
    %40 = vector.load %arg8[%c0_24, %c0_25] : memref<32x32xbf16, #tpu.memory_space<vmem>>, vector<32x32xbf16>
    %cst_26 = arith.constant dense<0.000000e+00> : vector<16x32xf32>
    %41 = tpu.matmul %39, %40, %cst_26 {dimension_numbers = #tpu.dot_dimension_numbers<[1], [0], [0], [1], [0, 0, 1, 1], [], []>} : vector<16x32xbf16>, vector<32x32xbf16>, vector<16x32xf32> -> vector<16x32xf32>
    %c0_27 = arith.constant 0 : index
    %c0_28 = arith.constant 0 : index
    %42 = vector.load %arg9[%c0_27, %c0_28] : memref<1x32xf32, #tpu.memory_space<vmem>>, vector<1x32xf32>
    %43 = vector.broadcast %42 : vector<1x32xf32> to vector<16x32xf32>
    %44 = arith.addf %41, %43 : vector<16x32xf32>
    %cst_29 = arith.constant 0.000000e+00 : f32
    %45 = vector.broadcast %cst_29 : f32 to vector<16x32xf32>
    %46 = arith.maximumf %44, %45 : vector<16x32xf32>
    %47 = arith.truncf %46 : vector<16x32xf32> to vector<16x32xbf16>
    %c0_30 = arith.constant 0 : index
    %c0_31 = arith.constant 0 : index
    %48 = vector.load %arg10[%c0_30, %c0_31] : memref<32x96xbf16, #tpu.memory_space<vmem>>, vector<32x96xbf16>
    %cst_32 = arith.constant dense<0.000000e+00> : vector<16x96xf32>
    %49 = tpu.matmul %47, %48, %cst_32 {dimension_numbers = #tpu.dot_dimension_numbers<[1], [0], [0], [1], [0, 0, 1, 1], [], []>} : vector<16x32xbf16>, vector<32x96xbf16>, vector<16x96xf32> -> vector<16x96xf32>
    %c0_33 = arith.constant 0 : index
    %c0_34 = arith.constant 0 : index
    %50 = vector.load %arg11[%c0_33, %c0_34] : memref<1x96xf32, #tpu.memory_space<vmem>>, vector<1x96xf32>
    %51 = vector.broadcast %50 : vector<1x96xf32> to vector<16x96xf32>
    %52 = arith.addf %49, %51 : vector<16x96xf32>
    %cst_35 = arith.constant 0.000000e+00 : f32
    %53 = vector.broadcast %cst_35 : f32 to vector<16x96xf32>
    %54 = arith.maximumf %52, %53 : vector<16x96xf32>
    %55 = arith.truncf %54 : vector<16x96xf32> to vector<16x96xbf16>
    %56 = vector.extract_strided_slice %55 {offsets = [0, 0], sizes = [16, 32], strides = [1, 1]} : vector<16x96xbf16> to vector<16x32xbf16>
    %57 = vector.extract_strided_slice %55 {offsets = [0, 32], sizes = [16, 32], strides = [1, 1]} : vector<16x96xbf16> to vector<16x32xbf16>
    %58 = vector.extract_strided_slice %55 {offsets = [0, 64], sizes = [16, 32], strides = [1, 1]} : vector<16x96xbf16> to vector<16x32xbf16>
    %59 = tpu.concatenate %56, %57, %58 in 0 : vector<16x32xbf16>, vector<16x32xbf16>, vector<16x32xbf16> -> vector<48x32xbf16>
    %c0_36 = arith.constant 0 : index
    %c0_37 = arith.constant 0 : index
    %60 = vector.load %arg0[%c0_36, %c0_37] : memref<16x48xbf16, #tpu.memory_space<vmem>>, vector<16x48xbf16>
    %cst_38 = arith.constant dense<0.000000e+00> : vector<16x32xf32>
    %61 = tpu.matmul %60, %59, %cst_38 {dimension_numbers = #tpu.dot_dimension_numbers<[1], [0], [0], [1], [0, 0, 1, 1], [], []>} : vector<16x48xbf16>, vector<48x32xbf16>, vector<16x32xf32> -> vector<16x32xf32>
    %62 = arith.truncf %61 : vector<16x32xf32> to vector<16x32xbf16>
    %c0_39 = arith.constant 0 : index
    %c0_40 = arith.constant 0 : index
    %63 = vector.load %arg12[%c0_39, %c0_40] : memref<32x128xbf16, #tpu.memory_space<vmem>>, vector<32x128xbf16>
    %cst_41 = arith.constant dense<0.000000e+00> : vector<16x128xf32>
    %64 = tpu.matmul %62, %63, %cst_41 {dimension_numbers = #tpu.dot_dimension_numbers<[1], [0], [0], [1], [0, 0, 1, 1], [], []>} : vector<16x32xbf16>, vector<32x128xbf16>, vector<16x128xf32> -> vector<16x128xf32>
    %c0_42 = arith.constant 0 : index
    %c0_43 = arith.constant 0 : index
    %65 = vector.load %arg13[%c0_42, %c0_43] : memref<1x128xf32, #tpu.memory_space<vmem>>, vector<1x128xf32>
    %66 = vector.broadcast %65 : vector<1x128xf32> to vector<16x128xf32>
    %67 = arith.addf %64, %66 : vector<16x128xf32>
    %cst_44 = arith.constant 0.000000e+00 : f32
    %68 = vector.broadcast %cst_44 : f32 to vector<16x128xf32>
    %69 = arith.maximumf %67, %68 : vector<16x128xf32>
    %c0_45 = arith.constant 0 : index
    %c0_46 = arith.constant 0 : index
    %70 = vector.load %arg14[%c0_45, %c0_46] : memref<16x128xf32, #tpu.memory_space<vmem>>, vector<16x128xf32>
    tpu.vector_store %arg14[%c0_45, %c0_46], %69 {strides = array<i32>} : memref<16x128xf32, #tpu.memory_space<vmem>>, vector<16x128xf32>,
    return
  }
}

</mosaic_0001>

<llo_original>
// kernel: forward.1
$region0: #{forward.1}
  #allocation0 [shape = 'u32[]', space=smem, size = 0x4, offset = 0x4, fixed_abs, tag = 'smem constant byte address 0x4 - core index']
  #allocation1 [shape = 'u32[144,128]{1,0:T(1,128)}', space=vmem, size = 0x12000, scoped, tag = 'internal scratch']
  %s0 = inlined_call_operand.hbm [shape: bf16[16,48], index: 0, kind: input, shape index: {}]
  %s1 = inlined_call_operand.vmem [shape: f32[16,32], index: 1, kind: input, shape index: {}]
  %s2 = inlined_call_operand.vmem [shape: bf16[32,96], index: 2, kind: input, shape index: {}]
  %s3 = inlined_call_operand.hbm [shape: f32[1,96], index: 3, kind: input, shape index: {}]
  %s4 = inlined_call_operand.vmem [shape: bf16[32,32], index: 4, kind: input, shape index: {}]
  %s5 = inlined_call_operand.hbm [shape: f32[1,32], index: 5, kind: input, shape index: {}]
  %s6 = inlined_call_operand.vmem [shape: bf16[32,96], index: 6, kind: input, shape index: {}]
  %s7 = inlined_call_operand.hbm [shape: f32[1,96], index: 7, kind: input, shape index: {}]
  %s8 = inlined_call_operand.vmem [shape: bf16[32,32], index: 8, kind: input, shape index: {}]
  %s9 = inlined_call_operand.hbm [shape: f32[1,32], index: 9, kind: input, shape index: {}]
  %s10 = inlined_call_operand.vmem [shape: bf16[32,96], index: 10, kind: input, shape index: {}]
  %s11 = inlined_call_operand.vmem [shape: f32[1,96], index: 11, kind: input, shape index: {}]
  %s12 = inlined_call_operand.vmem [shape: bf16[32,128], index: 12, kind: input, shape index: {}]
  %s13 = inlined_call_operand.vmem [shape: f32[1,128], index: 13, kind: input, shape index: {}]
  %s14 = inlined_call_operand.hbm [shape: f32[16,128], index: 14, kind: output, shape index: {}]
  %s15 = sld [smem:[#allocation0]]
  $region86: #{forward.1} parent=0
    _
  %s17 = ssub.s32 1, %s15
  %s18 = scalar_select 0, %s17, %s15
  $region1: #{forward.1} parent=0
    #allocation2 [shape = 'u8[4096]{0}', space=vmem, size = 0x1000, scoped, tag = 'input window, operand 0, single buffered']
    #allocation3 [shape = 's32[1]{0}', space=sflag, size = 0x4, scoped, tag = 'scoped memory for forward.1']
    #allocation4 [shape = 's32[1]{0}', space=sflag, size = 0x4, scoped, tag = 'scoped memory for forward.1']
    #allocation5 [shape = 'u8[512]{0}', space=vmem, size = 0x400, scoped, tag = 'input window, operand 3, single buffered']
    #allocation6 [shape = 's32[1]{0}', space=sflag, size = 0x4, scoped, tag = 'scoped memory for forward.1']
    #allocation7 [shape = 'u8[512]{0}', space=vmem, size = 0x400, scoped, tag = 'input window, operand 5, single buffered']
    #allocation8 [shape = 'u8[512]{0}', space=vmem, size = 0x400, scoped, tag = 'input window, operand 7, single buffered']
    #allocation9 [shape = 's32[1]{0}', space=sflag, size = 0x4, scoped, tag = 'scoped memory for forward.1']
    #allocation10 [shape = 'u8[512]{0}', space=vmem, size = 0x400, scoped, tag = 'input window, operand 9, single buffered']
    #allocation11 [shape = 'u8[8192]{0}', space=vmem, size = 0x2000, scoped, tag = 'output window, operand 0, single buffered']
    %19 = vsyncpa [#allocation3], 0
    %20 = vsyncpa [#allocation6], 0
    %21 = vsyncpa [#allocation9], 0
    %22 = vsyncpa [#allocation4], 0
    // Predicated region
    $region2: #{forward.1} parent=1 // pred_check
      _
    $region3: #{forward.1} parent=1 // pred_check_branch
      %24 = sbr.rel (0) target = $region5
    $region4: #{forward.1} parent=1 // pred_region
      %s26 = ssub.s32 128, 128
      %27 = vsyncadd [#allocation3], %s26
      %s28 = sshll.u32 [#allocation2], 4
      %s29 = int_to_ptr.vmem [resolvable:$true] %s28
      %34 = dma.hbm_to_vmem [thread:$0]  %s0, 128, %s29, [#allocation3], 64, 64, 4
    $region5: #{forward.1} parent=1 // pred_fallthru
      _
    // Predicated region
    $region6: #{forward.1} parent=1 // pred_check
      _
    $region7: #{forward.1} parent=1 // pred_check_branch
      %36 = sbr.rel (0) target = $region9
    $region8: #{forward.1} parent=1 // pred_region
      _
    $region9: #{forward.1} parent=1 // pred_fallthru
      _
    // Predicated region
    $region10: #{forward.1} parent=1 // pred_check
      _
    $region11: #{forward.1} parent=1 // pred_check_branch
      %38 = sbr.rel (0) target = $region13
    $region12: #{forward.1} parent=1 // pred_region
      _
    $region13: #{forward.1} parent=1 // pred_fallthru
      _
    // Predicated region
    $region14: #{forward.1} parent=1 // pred_check
      _
    $region15: #{forward.1} parent=1 // pred_check_branch
      %40 = sbr.rel (0) target = $region17
    $region16: #{forward.1} parent=1 // pred_region
      %s42 = ssub.s32 16, 16
      %43 = vsyncadd [#allocation6], %s42
      %s45 = sshll.u32 [#allocation5], 4
      %s46 = int_to_ptr.vmem [resolvable:$true] %s45
      %48 = dma.hbm_to_vmem [thread:$0]  %s3, 16, %s46, [#allocation6]
    $region17: #{forward.1} parent=1 // pred_fallthru
      _
    // Predicated region
    $region18: #{forward.1} parent=1 // pred_check
      _
    $region19: #{forward.1} parent=1 // pred_check_branch
      %50 = sbr.rel (0) target = $region21
    $region20: #{forward.1} parent=1 // pred_region
      _
    $region21: #{forward.1} parent=1 // pred_fallthru
      _
    // Predicated region
    $region22: #{forward.1} parent=1 // pred_check
      _
    $region23: #{forward.1} parent=1 // pred_check_branch
      %52 = sbr.rel (0) target = $region25
    $region24: #{forward.1} parent=1 // pred_region
      %s54 = ssub.s32 16, 16
      %55 = vsyncadd [#allocation6], %s54
      %s57 = sshll.u32 [#allocation7], 4
      %s58 = int_to_ptr.vmem [resolvable:$true] %s57
      %60 = dma.hbm_to_vmem [thread:$0]  %s5, 16, %s58, [#allocation6]
    $region25: #{forward.1} parent=1 // pred_fallthru
      _
    // Predicated region
    $region26: #{forward.1} parent=1 // pred_check
      _
    $region27: #{forward.1} parent=1 // pred_check_branch
      %62 = sbr.rel (0) target = $region29
    $region28: #{forward.1} parent=1 // pred_region
      _
    $region29: #{forward.1} parent=1 // pred_fallthru
      _
    // Predicated region
    $region30: #{forward.1} parent=1 // pred_check
      _
    $region31: #{forward.1} parent=1 // pred_check_branch
      %64 = sbr.rel (0) target = $region33
    $region32: #{forward.1} parent=1 // pred_region
      %s66 = ssub.s32 16, 16
      %67 = vsyncadd [#allocation9], %s66
      %s69 = sshll.u32 [#allocation8], 4
      %s70 = int_to_ptr.vmem [resolvable:$true] %s69
      %72 = dma.hbm_to_vmem [thread:$0]  %s7, 16, %s70, [#allocation9]
    $region33: #{forward.1} parent=1 // pred_fallthru
      _
    // Predicated region
    $region34: #{forward.1} parent=1 // pred_check
      _
    $region35: #{forward.1} parent=1 // pred_check_branch
      %74 = sbr.rel (0) target = $region37
    $region36: #{forward.1} parent=1 // pred_region
      _
    $region37: #{forward.1} parent=1 // pred_fallthru
      _
    // Predicated region
    $region38: #{forward.1} parent=1 // pred_check
      _
    $region39: #{forward.1} parent=1 // pred_check_branch
      %76 = sbr.rel (0) target = $region41
    $region40: #{forward.1} parent=1 // pred_region
      %s78 = ssub.s32 16, 16
      %79 = vsyncadd [#allocation9], %s78
      %s81 = sshll.u32 [#allocation10], 4
      %s82 = int_to_ptr.vmem [resolvable:$true] %s81
      %84 = dma.hbm_to_vmem [thread:$0]  %s9, 16, %s82, [#allocation9]
    $region41: #{forward.1} parent=1 // pred_fallthru
      _
    // Predicated region
    $region42: #{forward.1} parent=1 // pred_check
      _
    $region43: #{forward.1} parent=1 // pred_check_branch
      %86 = sbr.rel (0) target = $region45
    $region44: #{forward.1} parent=1 // pred_region
      _
    $region45: #{forward.1} parent=1 // pred_fallthru
      _
    // Predicated region
    $region46: #{forward.1} parent=1 // pred_check
      _
    $region47: #{forward.1} parent=1 // pred_check_branch
      %88 = sbr.rel (0) target = $region49
    $region48: #{forward.1} parent=1 // pred_region
      _
    $region49: #{forward.1} parent=1 // pred_fallthru
      _
    // Predicated region
    $region50: #{forward.1} parent=1 // pred_check
      _
    $region51: #{forward.1} parent=1 // pred_check_branch
      %90 = sbr.rel (0) target = $region53
    $region52: #{forward.1} parent=1 // pred_region
      _
    $region53: #{forward.1} parent=1 // pred_fallthru
      _
    // Predicated region
    $region54: #{forward.1} parent=1 // pred_check
      _
    $region55: #{forward.1} parent=1 // pred_check_branch
      %92 = sbr.rel (0) target = $region57
    $region56: #{forward.1} parent=1 // pred_region
      _
    $region57: #{forward.1} parent=1 // pred_fallthru
      _
    // Predicated region
    $region58: #{forward.1} parent=1 // pred_check
      _
    $region59: #{forward.1} parent=1 // pred_check_branch
      %94 = sbr.rel (0) target = $region61
    $region60: #{forward.1} parent=1 // pred_region
      %95 = dma.done [#allocation3], 128
    $region61: #{forward.1} parent=1 // pred_fallthru
      _
    // Predicated region
    $region62: #{forward.1} parent=1 // pred_check
      _
    $region63: #{forward.1} parent=1 // pred_check_branch
      %97 = sbr.rel (0) target = $region65
    $region64: #{forward.1} parent=1 // pred_region
      %98 = dma.done [#allocation6], 16
    $region65: #{forward.1} parent=1 // pred_fallthru
      _
    // Predicated region
    $region66: #{forward.1} parent=1 // pred_check
      _
    $region67: #{forward.1} parent=1 // pred_check_branch
      %100 = sbr.rel (0) target = $region69
    $region68: #{forward.1} parent=1 // pred_region
      %101 = dma.done [#allocation6], 16
    $region69: #{forward.1} parent=1 // pred_fallthru
      _
    // Predicated region
    $region70: #{forward.1} parent=1 // pred_check
      _
    $region71: #{forward.1} parent=1 // pred_check_branch
      %103 = sbr.rel (0) target = $region73
    $region72: #{forward.1} parent=1 // pred_region
      %104 = dma.done [#allocation9], 16
    $region73: #{forward.1} parent=1 // pred_fallthru
      _
    // Predicated region
    $region74: #{forward.1} parent=1 // pred_check
      _
    $region75: #{forward.1} parent=1 // pred_check_branch
      %106 = sbr.rel (0) target = $region77
    $region76: #{forward.1} parent=1 // pred_region
      %107 = dma.done [#allocation9], 16
    $region77: #{forward.1} parent=1 // pred_fallthru
      _
    %v109 = vld [vmem:[%s1] sm:$0xff]
    %v110 = vld [vmem:[%s1 + $0x8] sm:$0xff]
    %v111 = vpack.c.bf16 %v110, %v109
    %v112 = vld [vmem:[%s2] sm:$0xf]
    %v113 = vld [vmem:[%s2 + $0x4] sm:$0xf]
    %v114 = vld [vmem:[%s2 + $0x8] sm:$0xf]
    %v115 = vld [vmem:[%s2 + $0xc] sm:$0xf]
    %v116 = vld [vmem:[#allocation5] sm:$0x1]
    %v118 = vlaneseq
    %v119 = vshrl.u32 %v118, 7
    %v120 = vsub.s32 0, %v119
    %v121 = vrot.slane %v116, %v120
    %v127 = vunpack.c.l.b16 %v112
    %v128 = vunpack.c.l.b16 %v113
    %v129 = vunpack.c.l.b16 %v114
    %v130 = vunpack.c.l.b16 %v115
    %v131 = vpack.c.b16 %v128, %v127
    %v132 = vpack.c.b16 %v130, %v129
    %vm135 = vcmask 261120
    %v137 = vsel %vm135, %v111, 0
    %139 = vmatprep.subr.bf16.mxu0 0
    %140 = vmatpush1.bf16.msra.mxu0 %v131
    %141 = vmatprep.subr.bf16.mxu0 0
    %142 = vmatpush1.bf16.msra.mxu0 %v132
    %143 = vmatprep.subr.bf16.mxu0 0
    %144 = vmatpush1.bf16.msra.mxu0 0
    %145 = vmatprep.subr.bf16.mxu0 0
    %146 = vmatpush1.bf16.msra.mxu0 0
    %147 = vmatprep.subr.bf16.mxu0 0
    %148 = vmatpush1.bf16.msra.mxu0 0
    %149 = vmatprep.subr.bf16.mxu0 0
    %150 = vmatpush1.bf16.msra.mxu0 0
    %151 = vmatprep.subr.bf16.mxu0 0
    %152 = vmatpush1.bf16.msra.mxu0 0
    %153 = vmatprep.subr.bf16.mxu0 0
    %154 = vmatpush1.bf16.msra.mxu0 0
    %155 = vmatprep.subr.bf16.mxu0 0
    %156 = vmatpush1.bf16.msra.mxu0 0
    %157 = vmatprep.subr.bf16.mxu0 0
    %158 = vmatpush1.bf16.msra.mxu0 0
    %159 = vmatprep.subr.bf16.mxu0 0
    %160 = vmatpush1.bf16.msra.mxu0 0
    %161 = vmatprep.subr.bf16.mxu0 0
    %162 = vmatpush1.bf16.msra.mxu0 0
    %163 = vmatprep.subr.bf16.mxu0 0
    %164 = vmatpush1.bf16.msra.mxu0 0
    %165 = vmatprep.subr.bf16.mxu0 0
    %166 = vmatpush1.bf16.msra.mxu0 0
    %167 = vmatprep.subr.bf16.mxu0 0
    %168 = vmatpush1.bf16.msra.mxu0 0
    %169 = vmatprep.subr.bf16.mxu0 0
    %170 = vmatpush1.bf16.msra.mxu0 0
    %171 = vmatprep.mubr.bf16.mxu0 0
    %172 = vmatmul.mubr.bf16.gmra.mrb[0].mxu0 %v137
    %v173 = vpop.f32.mrb[0].mxu0
    %v174 = vadd.f32 %v121, %v173
    %v175 = vpop.f32.mrb[0].mxu0
    %v176 = vpop.f32.mrb[0].mxu0
    %v177 = vadd.f32 %v121, %v176
    %v178 = vpop.f32.mrb[0].mxu0
    %179 = vdwg.mxu0
    %v180 = vmax.f32 %v174, 0.0
    %v181 = vmax.f32 %v177, 0.0
    %v182 = vpack.c.bf16 %v181, %v180
    %184 = vrot.lane.b32.xlu0 %v182, 96
    %v185 = vpop.permute.xlu0 %184
    %187 = vrot.lane.b32.xlu0 %v182, 64
    %v188 = vpop.permute.xlu0 %187
    %v190 = vld [vmem:[#allocation2] sm:$0xf]
    %v191 = vld [vmem:[#allocation2 + $0x4] sm:$0xf]
    %v194 = vunpack.c.l.b16 %v190
    %v195 = vunpack.c.l.b16 %v191
    %v196 = vpack.c.b16 %v195, %v194
    %vm197 = vcmask 392192
    %v199 = vsel %vm197, %v196, 0
    %201 = vmatprep.subr.bf16.mxu0 0
    %202 = vmatpush1.bf16.msra.mxu0 %v182
    %203 = vmatprep.subr.bf16.mxu0 0
    %204 = vmatpush1.bf16.msra.mxu0 %v185
    %205 = vmatprep.subr.bf16.mxu0 0
    %206 = vmatpush1.bf16.msra.mxu0 %v188
    %207 = vmatprep.subr.bf16.mxu0 0
    %208 = vmatpush1.bf16.msra.mxu0 0
    %209 = vmatprep.subr.bf16.mxu0 0
    %210 = vmatpush1.bf16.msra.mxu0 0
    %211 = vmatprep.subr.bf16.mxu0 0
    %212 = vmatpush1.bf16.msra.mxu0 0
    %213 = vmatprep.subr.bf16.mxu0 0
    %214 = vmatpush1.bf16.msra.mxu0 0
    %215 = vmatprep.subr.bf16.mxu0 0
    %216 = vmatpush1.bf16.msra.mxu0 0
    %217 = vmatprep.subr.bf16.mxu0 0
    %218 = vmatpush1.bf16.msra.mxu0 0
    %219 = vmatprep.subr.bf16.mxu0 0
    %220 = vmatpush1.bf16.msra.mxu0 0
    %221 = vmatprep.subr.bf16.mxu0 0
    %222 = vmatpush1.bf16.msra.mxu0 0
    %223 = vmatprep.subr.bf16.mxu0 0
    %224 = vmatpush1.bf16.msra.mxu0 0
    %225 = vmatprep.subr.bf16.mxu0 0
    %226 = vmatpush1.bf16.msra.mxu0 0
    %227 = vmatprep.subr.bf16.mxu0 0
    %228 = vmatpush1.bf16.msra.mxu0 0
    %229 = vmatprep.subr.bf16.mxu0 0
    %230 = vmatpush1.bf16.msra.mxu0 0
    %231 = vmatprep.subr.bf16.mxu0 0
    %232 = vmatpush1.bf16.msra.mxu0 0
    %233 = vmatprep.mubr.bf16.mxu0 0
    %234 = vmatmul.mubr.bf16.gmra.mrb[0].mxu0 %v199
    %v235 = vpop.f32.mrb[0].mxu0
    %v236 = vadd.f32 0.0, %v235
    %v237 = vpop.f32.mrb[0].mxu0
    %v238 = vpop.f32.mrb[0].mxu0
    %v239 = vadd.f32 0.0, %v238
    %v240 = vpop.f32.mrb[0].mxu0
    %241 = vdwg.mxu0
    %v242 = vpack.c.bf16 %v239, %v236
    %v243 = vld [vmem:[%s4] sm:$0xf]
    %v244 = vld [vmem:[%s4 + $0x4] sm:$0xf]
    %v245 = vld [vmem:[%s4 + $0x8] sm:$0xf]
    %v246 = vld [vmem:[%s4 + $0xc] sm:$0xf]
    %v247 = vld [vmem:[#allocation7] sm:$0x1]
    %v249 = vlaneseq
    %v250 = vshrl.u32 %v249, 7
    %v251 = vsub.s32 0, %v250
    %v252 = vrot.slane %v247, %v251
    %v258 = vunpack.c.l.b16 %v243
    %v259 = vunpack.c.l.b16 %v244
    %v260 = vunpack.c.l.b16 %v245
    %v261 = vunpack.c.l.b16 %v246
    %v262 = vpack.c.b16 %v259, %v258
    %v263 = vpack.c.b16 %v261, %v260
    %v267 = vsel %vm135, %v242, 0
    %269 = vmatprep.subr.bf16.mxu0 0
    %270 = vmatpush1.bf16.msra.mxu0 %v262
    %271 = vmatprep.subr.bf16.mxu0 0
    %272 = vmatpush1.bf16.msra.mxu0 %v263
    %273 = vmatprep.subr.bf16.mxu0 0
    %274 = vmatpush1.bf16.msra.mxu0 0
    %275 = vmatprep.subr.bf16.mxu0 0
    %276 = vmatpush1.bf16.msra.mxu0 0
    %277 = vmatprep.subr.bf16.mxu0 0
    %278 = vmatpush1.bf16.msra.mxu0 0
    %279 = vmatprep.subr.bf16.mxu0 0
    %280 = vmatpush1.bf16.msra.mxu0 0
    %281 = vmatprep.subr.bf16.mxu0 0
    %282 = vmatpush1.bf16.msra.mxu0 0
    %283 = vmatprep.subr.bf16.mxu0 0
    %284 = vmatpush1.bf16.msra.mxu0 0
    %285 = vmatprep.subr.bf16.mxu0 0
    %286 = vmatpush1.bf16.msra.mxu0 0
    %287 = vmatprep.subr.bf16.mxu0 0
    %288 = vmatpush1.bf16.msra.mxu0 0
    %289 = vmatprep.subr.bf16.mxu0 0
    %290 = vmatpush1.bf16.msra.mxu0 0
    %291 = vmatprep.subr.bf16.mxu0 0
    %292 = vmatpush1.bf16.msra.mxu0 0
    %293 = vmatprep.subr.bf16.mxu0 0
    %294 = vmatpush1.bf16.msra.mxu0 0
    %295 = vmatprep.subr.bf16.mxu0 0
    %296 = vmatpush1.bf16.msra.mxu0 0
    %297 = vmatprep.subr.bf16.mxu0 0
    %298 = vmatpush1.bf16.msra.mxu0 0
    %299 = vmatprep.subr.bf16.mxu0 0
    %300 = vmatpush1.bf16.msra.mxu0 0
    %301 = vmatprep.mubr.bf16.mxu0 0
    %302 = vmatmul.mubr.bf16.gmra.mrb[0].mxu0 %v267
    %v303 = vpop.f32.mrb[0].mxu0
    %v304 = vadd.f32 %v252, %v303
    %v305 = vpop.f32.mrb[0].mxu0
    %v306 = vpop.f32.mrb[0].mxu0
    %v307 = vadd.f32 %v252, %v306
    %v308 = vpop.f32.mrb[0].mxu0
    %309 = vdwg.mxu0
    %v310 = vmax.f32 %v304, 0.0
    %v311 = vmax.f32 %v307, 0.0
    %v312 = vpack.c.bf16 %v311, %v310
    %v313 = vld [vmem:[%s6] sm:$0xf]
    %v314 = vld [vmem:[%s6 + $0x4] sm:$0xf]
    %v315 = vld [vmem:[%s6 + $0x8] sm:$0xf]
    %v316 = vld [vmem:[%s6 + $0xc] sm:$0xf]
    %v317 = vld [vmem:[#allocation8] sm:$0x1]
    %v319 = vlaneseq
    %v320 = vshrl.u32 %v319, 7
    %v321 = vsub.s32 0, %v320
    %v322 = vrot.slane %v317, %v321
    %v328 = vunpack.c.l.b16 %v313
    %v329 = vunpack.c.l.b16 %v314
    %v330 = vunpack.c.l.b16 %v315
    %v331 = vunpack.c.l.b16 %v316
    %v332 = vpack.c.b16 %v329, %v328
    %v333 = vpack.c.b16 %v331, %v330
    %v337 = vsel %vm135, %v312, 0
    %339 = vmatprep.subr.bf16.mxu0 0
    %340 = vmatpush1.bf16.msra.mxu0 %v332
    %341 = vmatprep.subr.bf16.mxu0 0
    %342 = vmatpush1.bf16.msra.mxu0 %v333
    %343 = vmatprep.subr.bf16.mxu0 0
    %344 = vmatpush1.bf16.msra.mxu0 0
    %345 = vmatprep.subr.bf16.mxu0 0
    %346 = vmatpush1.bf16.msra.mxu0 0
    %347 = vmatprep.subr.bf16.mxu0 0
    %348 = vmatpush1.bf16.msra.mxu0 0
    %349 = vmatprep.subr.bf16.mxu0 0
    %350 = vmatpush1.bf16.msra.mxu0 0
    %351 = vmatprep.subr.bf16.mxu0 0
    %352 = vmatpush1.bf16.msra.mxu0 0
    %353 = vmatprep.subr.bf16.mxu0 0
    %354 = vmatpush1.bf16.msra.mxu0 0
    %355 = vmatprep.subr.bf16.mxu0 0
    %356 = vmatpush1.bf16.msra.mxu0 0
    %357 = vmatprep.subr.bf16.mxu0 0
    %358 = vmatpush1.bf16.msra.mxu0 0
    %359 = vmatprep.subr.bf16.mxu0 0
    %360 = vmatpush1.bf16.msra.mxu0 0
    %361 = vmatprep.subr.bf16.mxu0 0
    %362 = vmatpush1.bf16.msra.mxu0 0
    %363 = vmatprep.subr.bf16.mxu0 0
    %364 = vmatpush1.bf16.msra.mxu0 0
    %365 = vmatprep.subr.bf16.mxu0 0
    %366 = vmatpush1.bf16.msra.mxu0 0
    %367 = vmatprep.subr.bf16.mxu0 0
    %368 = vmatpush1.bf16.msra.mxu0 0
    %369 = vmatprep.subr.bf16.mxu0 0
    %370 = vmatpush1.bf16.msra.mxu0 0
    %371 = vmatprep.mubr.bf16.mxu0 0
    %372 = vmatmul.mubr.bf16.gmra.mrb[0].mxu0 %v337
    %v373 = vpop.f32.mrb[0].mxu0
    %v374 = vadd.f32 %v322, %v373
    %v375 = vpop.f32.mrb[0].mxu0
    %v376 = vpop.f32.mrb[0].mxu0
    %v377 = vadd.f32 %v322, %v376
    %v378 = vpop.f32.mrb[0].mxu0
    %379 = vdwg.mxu0
    %v380 = vmax.f32 %v374, 0.0
    %v381 = vmax.f32 %v377, 0.0
    %v382 = vpack.c.bf16 %v381, %v380
    %384 = vrot.lane.b32.xlu0 %v382, 96
    %v385 = vpop.permute.xlu0 %384
    %387 = vrot.lane.b32.xlu0 %v382, 64
    %v388 = vpop.permute.xlu0 %387
    %390 = vmatprep.subr.bf16.mxu0 0
    %391 = vmatpush1.bf16.msra.mxu0 %v382
    %392 = vmatprep.subr.bf16.mxu0 0
    %393 = vmatpush1.bf16.msra.mxu0 %v385
    %394 = vmatprep.subr.bf16.mxu0 0
    %395 = vmatpush1.bf16.msra.mxu0 %v388
    %396 = vmatprep.subr.bf16.mxu0 0
    %397 = vmatpush1.bf16.msra.mxu0 0
    %398 = vmatprep.subr.bf16.mxu0 0
    %399 = vmatpush1.bf16.msra.mxu0 0
    %400 = vmatprep.subr.bf16.mxu0 0
    %401 = vmatpush1.bf16.msra.mxu0 0
    %402 = vmatprep.subr.bf16.mxu0 0
    %403 = vmatpush1.bf16.msra.mxu0 0
    %404 = vmatprep.subr.bf16.mxu0 0
    %405 = vmatpush1.bf16.msra.mxu0 0
    %406 = vmatprep.subr.bf16.mxu0 0
    %407 = vmatpush1.bf16.msra.mxu0 0
    %408 = vmatprep.subr.bf16.mxu0 0
    %409 = vmatpush1.bf16.msra.mxu0 0
    %410 = vmatprep.subr.bf16.mxu0 0
    %411 = vmatpush1.bf16.msra.mxu0 0
    %412 = vmatprep.subr.bf16.mxu0 0
    %413 = vmatpush1.bf16.msra.mxu0 0
    %414 = vmatprep.subr.bf16.mxu0 0
    %415 = vmatpush1.bf16.msra.mxu0 0
    %416 = vmatprep.subr.bf16.mxu0 0
    %417 = vmatpush1.bf16.msra.mxu0 0
    %418 = vmatprep.subr.bf16.mxu0 0
    %419 = vmatpush1.bf16.msra.mxu0 0
    %420 = vmatprep.subr.bf16.mxu0 0
    %421 = vmatpush1.bf16.msra.mxu0 0
    %422 = vmatprep.mubr.bf16.mxu0 0
    %423 = vmatmul.mubr.bf16.gmra.mrb[0].mxu0 %v199
    %v424 = vpop.f32.mrb[0].mxu0
    %v425 = vadd.f32 0.0, %v424
    %v426 = vpop.f32.mrb[0].mxu0
    %v427 = vpop.f32.mrb[0].mxu0
    %v428 = vadd.f32 0.0, %v427
    %v429 = vpop.f32.mrb[0].mxu0
    %430 = vdwg.mxu0
    %v431 = vpack.c.bf16 %v428, %v425
    %v432 = vld [vmem:[%s8] sm:$0xf]
    %v433 = vld [vmem:[%s8 + $0x4] sm:$0xf]
    %v434 = vld [vmem:[%s8 + $0x8] sm:$0xf]
    %v435 = vld [vmem:[%s8 + $0xc] sm:$0xf]
    %v436 = vld [vmem:[#allocation10] sm:$0x1]
    %v438 = vlaneseq
    %v439 = vshrl.u32 %v438, 7
    %v440 = vsub.s32 0, %v439
    %v441 = vrot.slane %v436, %v440
    %v447 = vunpack.c.l.b16 %v432
    %v448 = vunpack.c.l.b16 %v433
    %v449 = vunpack.c.l.b16 %v434
    %v450 = vunpack.c.l.b16 %v435
    %v451 = vpack.c.b16 %v448, %v447
    %v452 = vpack.c.b16 %v450, %v449
    %v456 = vsel %vm135, %v431, 0
    %458 = vmatprep.subr.bf16.mxu0 0
    %459 = vmatpush1.bf16.msra.mxu0 %v451
    %460 = vmatprep.subr.bf16.mxu0 0
    %461 = vmatpush1.bf16.msra.mxu0 %v452
    %462 = vmatprep.subr.bf16.mxu0 0
    %463 = vmatpush1.bf16.msra.mxu0 0
    %464 = vmatprep.subr.bf16.mxu0 0
    %465 = vmatpush1.bf16.msra.mxu0 0
    %466 = vmatprep.subr.bf16.mxu0 0
    %467 = vmatpush1.bf16.msra.mxu0 0
    %468 = vmatprep.subr.bf16.mxu0 0
    %469 = vmatpush1.bf16.msra.mxu0 0
    %470 = vmatprep.subr.bf16.mxu0 0
    %471 = vmatpush1.bf16.msra.mxu0 0
    %472 = vmatprep.subr.bf16.mxu0 0
    %473 = vmatpush1.bf16.msra.mxu0 0
    %474 = vmatprep.subr.bf16.mxu0 0
    %475 = vmatpush1.bf16.msra.mxu0 0
    %476 = vmatprep.subr.bf16.mxu0 0
    %477 = vmatpush1.bf16.msra.mxu0 0
    %478 = vmatprep.subr.bf16.mxu0 0
    %479 = vmatpush1.bf16.msra.mxu0 0
    %480 = vmatprep.subr.bf16.mxu0 0
    %481 = vmatpush1.bf16.msra.mxu0 0
    %482 = vmatprep.subr.bf16.mxu0 0
    %483 = vmatpush1.bf16.msra.mxu0 0
    %484 = vmatprep.subr.bf16.mxu0 0
    %485 = vmatpush1.bf16.msra.mxu0 0
    %486 = vmatprep.subr.bf16.mxu0 0
    %487 = vmatpush1.bf16.msra.mxu0 0
    %488 = vmatprep.subr.bf16.mxu0 0
    %489 = vmatpush1.bf16.msra.mxu0 0
    %490 = vmatprep.mubr.bf16.mxu0 0
    %491 = vmatmul.mubr.bf16.gmra.mrb[0].mxu0 %v456
    %v492 = vpop.f32.mrb[0].mxu0
    %v493 = vadd.f32 %v441, %v492
    %v494 = vpop.f32.mrb[0].mxu0
    %v495 = vpop.f32.mrb[0].mxu0
    %v496 = vadd.f32 %v441, %v495
    %v497 = vpop.f32.mrb[0].mxu0
    %498 = vdwg.mxu0
    %v499 = vmax.f32 %v493, 0.0
    %v500 = vmax.f32 %v496, 0.0
    %v501 = vpack.c.bf16 %v500, %v499
    %v502 = vld [vmem:[%s10] sm:$0xf]
    %v503 = vld [vmem:[%s10 + $0x4] sm:$0xf]
    %v504 = vld [vmem:[%s10 + $0x8] sm:$0xf]
    %v505 = vld [vmem:[%s10 + $0xc] sm:$0xf]
    %v506 = vld [vmem:[%s11] sm:$0x1]
    %v508 = vlaneseq
    %v509 = vshrl.u32 %v508, 7
    %v510 = vsub.s32 0, %v509
    %v511 = vrot.slane %v506, %v510
    %v517 = vunpack.c.l.b16 %v502
    %v518 = vunpack.c.l.b16 %v503
    %v519 = vunpack.c.l.b16 %v504
    %v520 = vunpack.c.l.b16 %v505
    %v521 = vpack.c.b16 %v518, %v517
    %v522 = vpack.c.b16 %v520, %v519
    %v526 = vsel %vm135, %v501, 0
    %528 = vmatprep.subr.bf16.mxu0 0
    %529 = vmatpush1.bf16.msra.mxu0 %v521
    %530 = vmatprep.subr.bf16.mxu0 0
    %531 = vmatpush1.bf16.msra.mxu0 %v522
    %532 = vmatprep.subr.bf16.mxu0 0
    %533 = vmatpush1.bf16.msra.mxu0 0
    %534 = vmatprep.subr.bf16.mxu0 0
    %535 = vmatpush1.bf16.msra.mxu0 0
    %536 = vmatprep.subr.bf16.mxu0 0
    %537 = vmatpush1.bf16.msra.mxu0 0
    %538 = vmatprep.subr.bf16.mxu0 0
    %539 = vmatpush1.bf16.msra.mxu0 0
    %540 = vmatprep.subr.bf16.mxu0 0
    %541 = vmatpush1.bf16.msra.mxu0 0
    %542 = vmatprep.subr.bf16.mxu0 0
    %543 = vmatpush1.bf16.msra.mxu0 0
    %544 = vmatprep.subr.bf16.mxu0 0
    %545 = vmatpush1.bf16.msra.mxu0 0
    %546 = vmatprep.subr.bf16.mxu0 0
    %547 = vmatpush1.bf16.msra.mxu0 0
    %548 = vmatprep.subr.bf16.mxu0 0
    %549 = vmatpush1.bf16.msra.mxu0 0
    %550 = vmatprep.subr.bf16.mxu0 0
    %551 = vmatpush1.bf16.msra.mxu0 0
    %552 = vmatprep.subr.bf16.mxu0 0
    %553 = vmatpush1.bf16.msra.mxu0 0
    %554 = vmatprep.subr.bf16.mxu0 0
    %555 = vmatpush1.bf16.msra.mxu0 0
    %556 = vmatprep.subr.bf16.mxu0 0
    %557 = vmatpush1.bf16.msra.mxu0 0
    %558 = vmatprep.subr.bf16.mxu0 0
    %559 = vmatpush1.bf16.msra.mxu0 0
    %560 = vmatprep.mubr.bf16.mxu0 0
    %561 = vmatmul.mubr.bf16.gmra.mrb[0].mxu0 %v526
    %v562 = vpop.f32.mrb[0].mxu0
    %v563 = vadd.f32 %v511, %v562
    %v564 = vpop.f32.mrb[0].mxu0
    %v565 = vpop.f32.mrb[0].mxu0
    %v566 = vadd.f32 %v511, %v565
    %v567 = vpop.f32.mrb[0].mxu0
    %568 = vdwg.mxu0
    %v569 = vmax.f32 %v563, 0.0
    %v570 = vmax.f32 %v566, 0.0
    %v571 = vpack.c.bf16 %v570, %v569
    %573 = vrot.lane.b32.xlu0 %v571, 96
    %v574 = vpop.permute.xlu0 %573
    %576 = vrot.lane.b32.xlu0 %v571, 64
    %v577 = vpop.permute.xlu0 %576
    %579 = vmatprep.subr.bf16.mxu0 0
    %580 = vmatpush1.bf16.msra.mxu0 %v571
    %581 = vmatprep.subr.bf16.mxu0 0
    %582 = vmatpush1.bf16.msra.mxu0 %v574
    %583 = vmatprep.subr.bf16.mxu0 0
    %584 = vmatpush1.bf16.msra.mxu0 %v577
    %585 = vmatprep.subr.bf16.mxu0 0
    %586 = vmatpush1.bf16.msra.mxu0 0
    %587 = vmatprep.subr.bf16.mxu0 0
    %588 = vmatpush1.bf16.msra.mxu0 0
    %589 = vmatprep.subr.bf16.mxu0 0
    %590 = vmatpush1.bf16.msra.mxu0 0
    %591 = vmatprep.subr.bf16.mxu0 0
    %592 = vmatpush1.bf16.msra.mxu0 0
    %593 = vmatprep.subr.bf16.mxu0 0
    %594 = vmatpush1.bf16.msra.mxu0 0
    %595 = vmatprep.subr.bf16.mxu0 0
    %596 = vmatpush1.bf16.msra.mxu0 0
    %597 = vmatprep.subr.bf16.mxu0 0
    %598 = vmatpush1.bf16.msra.mxu0 0
    %599 = vmatprep.subr.bf16.mxu0 0
    %600 = vmatpush1.bf16.msra.mxu0 0
    %601 = vmatprep.subr.bf16.mxu0 0
    %602 = vmatpush1.bf16.msra.mxu0 0
    %603 = vmatprep.subr.bf16.mxu0 0
    %604 = vmatpush1.bf16.msra.mxu0 0
    %605 = vmatprep.subr.bf16.mxu0 0
    %606 = vmatpush1.bf16.msra.mxu0 0
    %607 = vmatprep.subr.bf16.mxu0 0
    %608 = vmatpush1.bf16.msra.mxu0 0
    %609 = vmatprep.subr.bf16.mxu0 0
    %610 = vmatpush1.bf16.msra.mxu0 0
    %611 = vmatprep.mubr.bf16.mxu0 0
    %612 = vmatmul.mubr.bf16.gmra.mrb[0].mxu0 %v199
    %v613 = vpop.f32.mrb[0].mxu0
    %v614 = vadd.f32 0.0, %v613
    %v615 = vpop.f32.mrb[0].mxu0
    %v616 = vpop.f32.mrb[0].mxu0
    %v617 = vadd.f32 0.0, %v616
    %v618 = vpop.f32.mrb[0].mxu0
    %619 = vdwg.mxu0
    %v620 = vpack.c.bf16 %v617, %v614
    %v621 = vld [vmem:[%s12] sm:$0xf]
    %v622 = vld [vmem:[%s12 + $0x4] sm:$0xf]
    %v623 = vld [vmem:[%s12 + $0x8] sm:$0xf]
    %v624 = vld [vmem:[%s12 + $0xc] sm:$0xf]
    %v625 = vld [vmem:[%s13] sm:$0x1]
    %v627 = vlaneseq
    %v628 = vshrl.u32 %v627, 7
    %v629 = vsub.s32 0, %v628
    %v630 = vrot.slane %v625, %v629
    %v636 = vunpack.c.l.b16 %v621
    %v637 = vunpack.c.l.b16 %v622
    %v638 = vunpack.c.l.b16 %v623
    %v639 = vunpack.c.l.b16 %v624
    %v640 = vpack.c.b16 %v637, %v636
    %v641 = vpack.c.b16 %v639, %v638
    %v645 = vsel %vm135, %v620, 0
    %647 = vmatprep.subr.bf16.mxu0 0
    %648 = vmatpush1.bf16.msra.mxu0 %v640
    %649 = vmatprep.subr.bf16.mxu0 0
    %650 = vmatpush1.bf16.msra.mxu0 %v641
    %651 = vmatprep.subr.bf16.mxu0 0
    %652 = vmatpush1.bf16.msra.mxu0 0
    %653 = vmatprep.subr.bf16.mxu0 0
    %654 = vmatpush1.bf16.msra.mxu0 0
    %655 = vmatprep.subr.bf16.mxu0 0
    %656 = vmatpush1.bf16.msra.mxu0 0
    %657 = vmatprep.subr.bf16.mxu0 0
    %658 = vmatpush1.bf16.msra.mxu0 0
    %659 = vmatprep.subr.bf16.mxu0 0
    %660 = vmatpush1.bf16.msra.mxu0 0
    %661 = vmatprep.subr.bf16.mxu0 0
    %662 = vmatpush1.bf16.msra.mxu0 0
    %663 = vmatprep.subr.bf16.mxu0 0
    %664 = vmatpush1.bf16.msra.mxu0 0
    %665 = vmatprep.subr.bf16.mxu0 0
    %666 = vmatpush1.bf16.msra.mxu0 0
    %667 = vmatprep.subr.bf16.mxu0 0
    %668 = vmatpush1.bf16.msra.mxu0 0
    %669 = vmatprep.subr.bf16.mxu0 0
    %670 = vmatpush1.bf16.msra.mxu0 0
    %671 = vmatprep.subr.bf16.mxu0 0
    %672 = vmatpush1.bf16.msra.mxu0 0
    %673 = vmatprep.subr.bf16.mxu0 0
    %674 = vmatpush1.bf16.msra.mxu0 0
    %675 = vmatprep.subr.bf16.mxu0 0
    %676 = vmatpush1.bf16.msra.mxu0 0
    %677 = vmatprep.subr.bf16.mxu0 0
    %678 = vmatpush1.bf16.msra.mxu0 0
    %679 = vmatprep.mubr.bf16.mxu0 0
    %680 = vmatmul.mubr.bf16.gmra.mrb[0].mxu0 %v645
    %v681 = vpop.f32.mrb[0].mxu0
    %v682 = vadd.f32 %v630, %v681
    %v683 = vpop.f32.mrb[0].mxu0
    %v684 = vpop.f32.mrb[0].mxu0
    %v685 = vadd.f32 %v630, %v684
    %v686 = vpop.f32.mrb[0].mxu0
    %687 = vdwg.mxu0
    %v688 = vmax.f32 %v682, 0.0
    %v689 = vmax.f32 %v685, 0.0
    %690 = vst [vmem:[#allocation11] sm:$0xff] %v688
    %691 = vst [vmem:[#allocation11 + $0x8] sm:$0xff] %v689
    // Predicated region
    $region78: #{forward.1} parent=1 // pred_check
      _
    $region79: #{forward.1} parent=1 // pred_check_branch
      %693 = sbr.rel (0) target = $region81
    $region80: #{forward.1} parent=1 // pred_region
      %s695 = ssub.s32 256, 256
      %696 = vsyncadd [#allocation4], %s695
      %s697 = sshll.u32 [#allocation11], 4
      %s698 = int_to_ptr.vmem [resolvable:$true] %s697
      %703 = dma.vmem_to_hbm [thread:$0]  %s698, 256, %s14, [#allocation4], 128, 128, 8
    $region81: #{forward.1} parent=1 // pred_fallthru
      _
    // Predicated region
    $region82: #{forward.1} parent=1 // pred_check
      _
    $region83: #{forward.1} parent=1 // pred_check_branch
      %705 = sbr.rel (0) target = $region85
    $region84: #{forward.1} parent=1 // pred_region
      %706 = dma.done [#allocation4], 256
    $region85: #{forward.1} parent=1 // pred_fallthru
      _
    %707 = vsyncpa [#allocation3], 1
    %708 = vsyncpa [#allocation6], 1
    %709 = vsyncpa [#allocation9], 1
    %710 = vsyncpa [#allocation4], 1

</llo_original>
